<compile_context>
chip_gen: v5e
topology: v5e:2x2
jax: 0.10.0
libtpu: 0.0.40
codegen_flags: <defaults>
</compile_context>

<pallas_src>
import functools

import jax
import jax.numpy as jnp
from jax.experimental import pallas as pl
from jax.experimental.pallas import tpu as pltpu


def _round_up(x: int, m: int) -> int:
    return (x + m - 1) // m * m


def _pad2(x: jax.Array, rows: int, cols: int) -> jax.Array:
    """Zero-pad a 2-D array to (rows, cols); no-op when already that shape."""
    pr, pc = rows - x.shape[0], cols - x.shape[1]
    if pr == 0 and pc == 0:
        return x
    return jnp.pad(x, ((0, pr), (0, pc)))


def _vmem_cap_bytes() -> int:
    """~75% of physical VMEM (v5e/v6e: ~96 MiB, v7x: ~48 MiB); safe fallback."""
    try:
        cap = int(getattr(pltpu.get_tpu_info(), "vmem_capacity_bytes") * 3 // 4)
    except Exception:
        cap = 48 * 1024 * 1024
    return max(cap, 32 * 1024 * 1024)


def _plan_tiles(m_pad, k_pad, n_cols, a_isz, b_isz, out_isz, cap):
    """Pick (tm, tk, b_resident) for an (m_pad x k_pad) @ (k_pad x n_cols) matmul
    that fits the VMEM budget `cap`."""
    tm_divs = [c for c in (512, 256, 128) if m_pad % c == 0]
    # Prefer >= 2 row tiles so the "parallel" axis can split across v7x's 2 TCs.
    tm_cands = ([c for c in tm_divs if m_pad // c >= 2]
                + [c for c in tm_divs if m_pad // c < 2]) or [m_pad]
    tk_cands = [c for c in (2048, 1024, 512, 256, 128) if k_pad % c == 0] or [k_pad]

    def need(tm, tk, resident):
        # Pallas double-buffers each input by default (only one buffer is ever
        # filled for the constant-index resident operand, but budget for 2).
        a = 2 * tm * tk * a_isz
        b = 2 * (k_pad if resident else tk) * n_cols * b_isz
        o = 2 * tm * n_cols * out_isz
        acc = tm * n_cols * 4
        return a + b + o + acc

    for tm in tm_cands:
        for resident in (True, False):      # residency (bandwidth) beats bigger tk
            for tk in tk_cands:
                if need(tm, tk, resident) <= cap:
                    return tm, tk, resident
    return 128, 128, False


def _mm_kernel(a_ref, b_ref, o_ref, acc_ref, *, tk, relu, b_resident):
    """acc += A_tile @ B_tile over the k grid axis; relu/cast epilogue on last k."""
    k = pl.program_id(1)

    if b_resident:
        start = pl.multiple_of(k * tk, tk)
        b_tile = b_ref[pl.ds(start, tk), :]
    else:
        b_tile = b_ref[...]

    prod = jnp.dot(a_ref[...], b_tile, preferred_element_type=jnp.float32)

    @pl.when(k == 0)
    def _():
        acc_ref[...] = prod            # direct store: no zero-init + read-modify-write

    @pl.when(k != 0)
    def _():
        acc_ref[...] += prod

    @pl.when(k == pl.num_programs(1) - 1)
    def _():
        out = acc_ref[...]
        if relu:
            out = jnp.maximum(out, 0.0)
        # TODO(synk): bias=True would add a broadcast bias row here; default
        # bias=False is omitted.
        o_ref[...] = out.astype(o_ref.dtype)


def _matmul_padded(a_p: jax.Array, b_p: jax.Array, *, relu: bool, out_dtype):
    """relu?(a_p @ b_p) for 128-aligned padded operands; returns padded result."""
    m_pad, k_pad = a_p.shape
    k_pad2, n_cols = b_p.shape
    assert k_pad == k_pad2

    cap = _vmem_cap_bytes()
    a_isz = jnp.dtype(a_p.dtype).itemsize
    b_isz = jnp.dtype(b_p.dtype).itemsize
    out_isz = jnp.dtype(out_dtype).itemsize
    tm, tk, b_resident = _plan_tiles(m_pad, k_pad, n_cols, a_isz, b_isz, out_isz, cap)
    grid = (m_pad // tm, k_pad // tk)

    if b_resident:
        # Constant index_map => DMA'd once, stays resident across the whole grid.
        b_spec = pl.BlockSpec((k_pad, n_cols), lambda i, k: (0, 0))
    else:
        b_spec = pl.BlockSpec((tk, n_cols), lambda i, k: (k, 0))

    kernel = functools.partial(_mm_kernel, tk=tk, relu=relu, b_resident=b_resident)

    cost = pl.CostEstimate(
        flops=2 * m_pad * k_pad * n_cols,
        transcendentals=0,
        bytes_accessed=(
            a_p.size * a_isz
            + (1 if b_resident else grid[0]) * b_p.size * b_isz
            + m_pad * n_cols * out_isz
        ),
    )

    return pl.pallas_call(
        kernel,
        out_shape=jax.ShapeDtypeStruct((m_pad, n_cols), out_dtype),
        grid_spec=pltpu.PrefetchScalarGridSpec(
            num_scalar_prefetch=0,
            grid=grid,
            in_specs=[
                pl.BlockSpec((tm, tk), lambda i, k: (i, k)),   # A tile
                b_spec,                                        # B resident / streamed
            ],
            out_specs=pl.BlockSpec((tm, n_cols), lambda i, k: (i, 0)),
            scratch_shapes=[pltpu.VMEM((tm, n_cols), jnp.float32)],
        ),
        compiler_params=pltpu.CompilerParams(
            dimension_semantics=("parallel", "arbitrary"),
            vmem_limit_bytes=int(cap),
        ),
        cost_estimate=cost,
    )(a_p, b_p)


def graph_convolution(hidden: jax.Array, adj: jax.Array, weight: jax.Array) -> jax.Array:
    """GCN forward: relu((adj @ hidden) @ weight).

    hidden: [N, in_dim], adj: [N, N], weight: [in_dim, out_dim]
    (weight is the PyTorch Linear weight transposed, i.e. linear.weight.T).
    """
    assert hidden.shape[0] == adj.shape[0] and adj.shape[0] == adj.shape[1], (
        "Wrong input shape: hidden {}, adj {}".format(hidden.shape, adj.shape))
    n, in_dim = hidden.shape
    assert weight.shape[0] == in_dim
    out_dim = weight.shape[1]
    out_dtype = hidden.dtype

    n_pad = _round_up(n, 128)
    in_pad = _round_up(in_dim, 128)
    out_pad = _round_up(out_dim, 128)

    # Zero-pad to 128-aligned tiles (exact under matmul; skipped when aligned).
    # adj keeps its native dtype -- no separate N^2 cast/materialization pass.
    adj_p = _pad2(adj, n_pad, n_pad)
    h_p = _pad2(hidden.astype(jnp.float32), n_pad, in_pad)
    w_p = _pad2(weight.astype(jnp.float32), in_pad, out_pad)

    # drop == 0.0 (module default) => Dropout is identity, so
    #   relu((adj @ hidden) @ W) == relu(adj @ (hidden @ W)).
    # TODO(synk): for drop > 0.0 this reorder is invalid -- keep adj @ hidden
    # first and apply a pltpu.prng_random_bits dropout mask (with 1/(1-p)
    # rescale) between the two matmuls.
    hw_p = _matmul_padded(h_p, w_p, relu=False, out_dtype=jnp.float32)
    out_p = _matmul_padded(adj_p, hw_p, relu=True, out_dtype=out_dtype)
    return out_p[:n, :out_dim]


if __name__ == "__main__":
    # Small shapes consistent with the module's forward: N nodes, in_dim -> out_dim.
    N, IN_DIM, OUT_DIM = 8, 32, 16

    key = jax.random.PRNGKey(0)
    k_h, k_a, k_w = jax.random.split(key, 3)

    hidden = jax.random.normal(k_h, (N, IN_DIM), dtype=jnp.float32)
    adj = jax.random.uniform(k_a, (N, N), dtype=jnp.float32)
    bound = 1.0 / (IN_DIM ** 0.5)
    weight = jax.random.uniform(
        k_w, (IN_DIM, OUT_DIM), dtype=jnp.float32, minval=-bound, maxval=bound
    )

    out = graph_convolution(hidden, adj, weight)
    out = jax.block_until_ready(out)

    # Pure-f32 reference matching the PyTorch forward (drop=0, bias=False, relu).
    hp = jax.lax.Precision.HIGHEST
    ref = jnp.maximum(
        jnp.dot(jnp.dot(adj, hidden, precision=hp), weight, precision=hp), 0.0
    )

    assert out.shape == (N, OUT_DIM)
    err = float(jnp.max(jnp.abs(out - ref)))
    # Tolerance covers the MXU's multi-pass-bf16 f32 matmul rounding path.
    assert jnp.allclose(out, ref, atol=2e-2, rtol=2e-2), (
        "max abs err = {}".format(err)
    )

    print("KERNEL_OK")
</pallas_src>

<mosaic_0001>
module attributes {stable_mosaic.version = 11 : i64} {
  func.func @_mm_kernel(%arg0: i32, %arg1: i32, %arg2: memref<128x128xf32, #tpu.memory_space<vmem>>, %arg3: memref<128x128xf32, #tpu.memory_space<vmem>>, %arg4: memref<128x128xf32, #tpu.memory_space<vmem>>, %arg5: memref<128x128xf32, #tpu.memory_space<vmem>>) attributes {dimension_semantics = [#tpu.dimension_semantics<parallel>, #tpu.dimension_semantics<arbitrary>], iteration_bounds = array<i64: 1, 1>, scalar_prefetch = 0 : i64, scratch_operands = 1 : i64, tpu.core_type = #tpu.core_type<tc>, window_params = [{transform_indices = @transform_0, window_bounds = array<i64: 128, 128>}, {pipeline_mode = #tpu.pipeline_mode<synchronous>, transform_indices = @transform_1, window_bounds = array<i64: 128, 128>}, {transform_indices = @transform_2, window_bounds = array<i64: 128, 128>}]} {
    %c128_i32 = arith.constant 128 : i32
    %0 = arith.muli %arg1, %c128_i32 : i32
    %1 = tpu.assume_multiple %0, 128 : i32
    %2 = arith.index_cast %1 : i32 to index
    %c0 = arith.constant 0 : index
    %3 = vector.load %arg3[%2, %c0] : memref<128x128xf32, #tpu.memory_space<vmem>>, vector<128x128xf32>
    %c0_0 = arith.constant 0 : index
    %c0_1 = arith.constant 0 : index
    %4 = vector.load %arg2[%c0_0, %c0_1] : memref<128x128xf32, #tpu.memory_space<vmem>>, vector<128x128xf32>
    %cst = arith.constant dense<0.000000e+00> : vector<128x128xf32>
    %5 = tpu.matmul %4, %3, %cst {dimension_numbers = #tpu.dot_dimension_numbers<[1], [0], [0], [1], [0, 0, 1, 1], [], []>} : vector<128x128xf32>, vector<128x128xf32>, vector<128x128xf32> -> vector<128x128xf32>
    %c0_i32 = arith.constant 0 : i32
    %6 = arith.cmpi eq, %arg1, %c0_i32 : i32
    %7 = arith.extui %6 : i1 to i32
    %c0_i32_2 = arith.constant 0 : i32
    %8 = arith.cmpi ne, %7, %c0_i32_2 : i32
    scf.if %8 {
      %c0_7 = arith.constant 0 : index
      %c0_8 = arith.constant 0 : index
      %15 = vector.load %arg5[%c0_7, %c0_8] : memref<128x128xf32, #tpu.memory_space<vmem>>, vector<128x128xf32>
      tpu.vector_store %arg5[%c0_7, %c0_8], %5 {strides = array<i32>} : memref<128x128xf32, #tpu.memory_space<vmem>>, vector<128x128xf32>,
    } else {
    }
    %c0_i32_3 = arith.constant 0 : i32
    %9 = arith.cmpi ne, %arg1, %c0_i32_3 : i32
    %10 = arith.extui %9 : i1 to i32
    %c0_i32_4 = arith.constant 0 : i32
    %11 = arith.cmpi ne, %10, %c0_i32_4 : i32
    scf.if %11 {
      %c0_7 = arith.constant 0 : index
      %c0_8 = arith.constant 0 : index
      %15 = vector.load %arg5[%c0_7, %c0_8] : memref<128x128xf32, #tpu.memory_space<vmem>>, vector<128x128xf32>
      %16 = arith.addf %15, %5 : vector<128x128xf32>
      %c0_9 = arith.constant 0 : index
      %c0_10 = arith.constant 0 : index
      %17 = vector.load %arg5[%c0_9, %c0_10] : memref<128x128xf32, #tpu.memory_space<vmem>>, vector<128x128xf32>
      tpu.vector_store %arg5[%c0_9, %c0_10], %16 {strides = array<i32>} : memref<128x128xf32, #tpu.memory_space<vmem>>, vector<128x128xf32>,
    } else {
    }
    %c0_i32_5 = arith.constant 0 : i32
    %12 = arith.cmpi eq, %arg1, %c0_i32_5 : i32
    %13 = arith.extui %12 : i1 to i32
    %c0_i32_6 = arith.constant 0 : i32
    %14 = arith.cmpi ne, %13, %c0_i32_6 : i32
    scf.if %14 {
      %c0_7 = arith.constant 0 : index
      %c0_8 = arith.constant 0 : index
      %15 = vector.load %arg5[%c0_7, %c0_8] : memref<128x128xf32, #tpu.memory_space<vmem>>, vector<128x128xf32>
      %c0_9 = arith.constant 0 : index
      %c0_10 = arith.constant 0 : index
      %16 = vector.load %arg4[%c0_9, %c0_10] : memref<128x128xf32, #tpu.memory_space<vmem>>, vector<128x128xf32>
      tpu.vector_store %arg4[%c0_9, %c0_10], %15 {strides = array<i32>} : memref<128x128xf32, #tpu.memory_space<vmem>>, vector<128x128xf32>,
    } else {
    }
    return
  }
  func.func @transform_0(%arg0: i32, %arg1: i32) -> (i32, i32) {
    %c0_i32 = arith.constant 0 : i32
    return %arg0, %arg1 : i32, i32
  }
  func.func @transform_1(%arg0: i32, %arg1: i32) -> (i32, i32) {
    %c0_i32 = arith.constant 0 : i32
    %c0_i32_0 = arith.constant 0 : i32
    %c0_i32_1 = arith.constant 0 : i32
    return %c0_i32, %c0_i32_0 : i32, i32
  }
  func.func @transform_2(%arg0: i32, %arg1: i32) -> (i32, i32) {
    %c0_i32 = arith.constant 0 : i32
    %c0_i32_0 = arith.constant 0 : i32
    return %arg0, %c0_i32 : i32, i32
  }
}

</mosaic_0001>

<llo_original>
// kernel: tpu_custom_call.1
$region0: #{tpu_custom_call.1}
  #allocation0 [shape = 'u32[]', space=smem, size = 0x4, offset = 0x4, fixed_abs, tag = 'smem constant byte address 0x4 - core index']
  #allocation1 [shape = 'u32[72,128]{1,0:T(1,128)}', space=vmem, size = 0x9000, scoped, tag = 'internal scratch']
  #allocation2 [shape = 'f32[128,128]{1,0:T(8,128)}', space=vmem, size = 0x10000, scoped, tag = 'scratch operand']
  %s0 = inlined_call_operand.hbm [shape: f32[128,128], index: 0, kind: input, shape index: {}]
  %s1 = inlined_call_operand.hbm [shape: f32[128,128], index: 1, kind: input, shape index: {}]
  %s2 = inlined_call_operand.hbm [shape: f32[128,128], index: 2, kind: output, shape index: {}]
  %s3 = sld [smem:[#allocation0]]
  $region38: #{tpu_custom_call.1} parent=0
    _
  %s5 = ssub.s32 1, %s3
  %s6 = scalar_select 0, %s5, %s3
  $region1: #{tpu_custom_call.1} parent=0
    #allocation3 [shape = 'u8[65536]{0}', space=vmem, size = 0x10000, scoped, tag = 'input window, operand 0, single buffered']
    #allocation4 [shape = 's32[1]{0}', space=sflag, size = 0x4, scoped, tag = 'scoped memory for tpu_custom_call.1']
    #allocation5 [shape = 's32[1]{0}', space=sflag, size = 0x4, scoped, tag = 'scoped memory for tpu_custom_call.1']
    #allocation6 [shape = 'u8[65536]{0}', space=vmem, size = 0x10000, scoped, tag = 'input window, operand 1, single buffered']
    #allocation7 [shape = 's32[1]{0}', space=sflag, size = 0x4, scoped, tag = 'scoped memory for tpu_custom_call.1']
    #allocation8 [shape = 'u8[65536]{0}', space=vmem, size = 0x10000, scoped, tag = 'output window, operand 0, single buffered']
    %7 = vsyncpa [#allocation4], 0
    %8 = vsyncpa [#allocation7], 0
    %9 = vsyncpa [#allocation5], 0
    // Predicated region
    $region2: #{tpu_custom_call.1} parent=1 // pred_check
      _
    $region3: #{tpu_custom_call.1} parent=1 // pred_check_branch
      %11 = sbr.rel (0) target = $region5
    $region4: #{tpu_custom_call.1} parent=1 // pred_region
      %13 = vsyncadd [#allocation4], 0
      %s14 = sshll.u32 %s0, 4
      %s15 = int_to_ptr.hbm [resolvable:$true] %s14
      %s16 = sshll.u32 [#allocation3], 4
      %s17 = int_to_ptr.vmem [resolvable:$true] %s16
      %22 = dma.hbm_to_vmem [thread:$0]  %s15, 2048, %s17, [#allocation4], 128, 128, 8
    $region5: #{tpu_custom_call.1} parent=1 // pred_fallthru
      _
    // Predicated region
    $region6: #{tpu_custom_call.1} parent=1 // pred_check
      _
    $region7: #{tpu_custom_call.1} parent=1 // pred_check_branch
      %24 = sbr.rel (0) target = $region9
    $region8: #{tpu_custom_call.1} parent=1 // pred_region
      %26 = vsyncadd [#allocation7], 0
      %s27 = sshll.u32 %s1, 4
      %s28 = int_to_ptr.hbm [resolvable:$true] %s27
      %s29 = sshll.u32 [#allocation6], 4
      %s30 = int_to_ptr.vmem [resolvable:$true] %s29
      %35 = dma.hbm_to_vmem [thread:$0]  %s28, 2048, %s30, [#allocation7], 128, 128, 8
    $region9: #{tpu_custom_call.1} parent=1 // pred_fallthru
      _
    // Predicated region
    $region10: #{tpu_custom_call.1} parent=1 // pred_check
      _
    $region11: #{tpu_custom_call.1} parent=1 // pred_check_branch
      %37 = sbr.rel (0) target = $region13
    $region12: #{tpu_custom_call.1} parent=1 // pred_region
      %39 = dma.done [#allocation4], 2048
    $region13: #{tpu_custom_call.1} parent=1 // pred_fallthru
      _
    // Predicated region
    $region14: #{tpu_custom_call.1} parent=1 // pred_check
      _
    $region15: #{tpu_custom_call.1} parent=1 // pred_check_branch
      %41 = sbr.rel (0) target = $region17
    $region16: #{tpu_custom_call.1} parent=1 // pred_region
      %43 = dma.done [#allocation7], 2048
    $region17: #{tpu_custom_call.1} parent=1 // pred_fallthru
      _
    %s44 = smul.u32 0, 128
    %s45 = scalar_lea.vmem [#allocation6], %s44
    %v46 = vld [vmem:[%s45] sm:$0xff]
    %v47 = vld [vmem:[%s45 + $0x8] sm:$0xff]
    %v48 = vld [vmem:[%s45 + $0x10] sm:$0xff]
    %v49 = vld [vmem:[%s45 + $0x18] sm:$0xff]
    %v50 = vld [vmem:[%s45 + $0x20] sm:$0xff]
    %v51 = vld [vmem:[%s45 + $0x28] sm:$0xff]
    %v52 = vld [vmem:[%s45 + $0x30] sm:$0xff]
    %v53 = vld [vmem:[%s45 + $0x38] sm:$0xff]
    %v54 = vld [vmem:[%s45 + $0x40] sm:$0xff]
    %v55 = vld [vmem:[%s45 + $0x48] sm:$0xff]
    %v56 = vld [vmem:[%s45 + $0x50] sm:$0xff]
    %v57 = vld [vmem:[%s45 + $0x58] sm:$0xff]
    %v58 = vld [vmem:[%s45 + $0x60] sm:$0xff]
    %v59 = vld [vmem:[%s45 + $0x68] sm:$0xff]
    %v60 = vld [vmem:[%s45 + $0x70] sm:$0xff]
    %v61 = vld [vmem:[%s45 + $0x78] sm:$0xff]
    %v62 = vld [vmem:[#allocation3] sm:$0xff]
    %v63 = vld [vmem:[#allocation3 + $0x8] sm:$0xff]
    %v64 = vld [vmem:[#allocation3 + $0x10] sm:$0xff]
    %v65 = vld [vmem:[#allocation3 + $0x18] sm:$0xff]
    %v66 = vld [vmem:[#allocation3 + $0x20] sm:$0xff]
    %v67 = vld [vmem:[#allocation3 + $0x28] sm:$0xff]
    %v68 = vld [vmem:[#allocation3 + $0x30] sm:$0xff]
    %v69 = vld [vmem:[#allocation3 + $0x38] sm:$0xff]
    %v70 = vld [vmem:[#allocation3 + $0x40] sm:$0xff]
    %v71 = vld [vmem:[#allocation3 + $0x48] sm:$0xff]
    %v72 = vld [vmem:[#allocation3 + $0x50] sm:$0xff]
    %v73 = vld [vmem:[#allocation3 + $0x58] sm:$0xff]
    %v74 = vld [vmem:[#allocation3 + $0x60] sm:$0xff]
    %v75 = vld [vmem:[#allocation3 + $0x68] sm:$0xff]
    %v76 = vld [vmem:[#allocation3 + $0x70] sm:$0xff]
    %v77 = vld [vmem:[#allocation3 + $0x78] sm:$0xff]
    %78 = vmatpush.msra.mxu0 %v61
    %79 = vmatpush.msra.mxu0 %v60
    %80 = vmatpush.msra.mxu0 %v59
    %81 = vmatpush.msra.mxu0 %v58
    %82 = vmatpush.msra.mxu0 %v57
    %83 = vmatpush.msra.mxu0 %v56
    %84 = vmatpush.msra.mxu0 %v55
    %85 = vmatpush.msra.mxu0 %v54
    %86 = vmatpush.msra.mxu0 %v53
    %87 = vmatpush.msra.mxu0 %v52
    %88 = vmatpush.msra.mxu0 %v51
    %89 = vmatpush.msra.mxu0 %v50
    %90 = vmatpush.msra.mxu0 %v49
    %91 = vmatpush.msra.mxu0 %v48
    %92 = vmatpush.msra.mxu0 %v47
    %93 = vmatpush.msra.mxu0 %v46
    %94 = vmatmul.f32.gmra.mxu0 %v62
    %v95 = vpop.f32.mrf.mxu0
    %v96 = vadd.f32 0.0, %v95
    %97 = vmatmul.f32.gmra.mxu0 %v63
    %v98 = vpop.f32.mrf.mxu0
    %v99 = vadd.f32 0.0, %v98
    %100 = vmatmul.f32.gmra.mxu0 %v64
    %v101 = vpop.f32.mrf.mxu0
    %v102 = vadd.f32 0.0, %v101
    %103 = vmatmul.f32.gmra.mxu0 %v65
    %v104 = vpop.f32.mrf.mxu0
    %v105 = vadd.f32 0.0, %v104
    %106 = vmatmul.f32.gmra.mxu0 %v66
    %v107 = vpop.f32.mrf.mxu0
    %v108 = vadd.f32 0.0, %v107
    %109 = vmatmul.f32.gmra.mxu0 %v67
    %v110 = vpop.f32.mrf.mxu0
    %v111 = vadd.f32 0.0, %v110
    %112 = vmatmul.f32.gmra.mxu0 %v68
    %v113 = vpop.f32.mrf.mxu0
    %v114 = vadd.f32 0.0, %v113
    %115 = vmatmul.f32.gmra.mxu0 %v69
    %v116 = vpop.f32.mrf.mxu0
    %v117 = vadd.f32 0.0, %v116
    %118 = vmatmul.f32.gmra.mxu0 %v70
    %v119 = vpop.f32.mrf.mxu0
    %v120 = vadd.f32 0.0, %v119
    %121 = vmatmul.f32.gmra.mxu0 %v71
    %v122 = vpop.f32.mrf.mxu0
    %v123 = vadd.f32 0.0, %v122
    %124 = vmatmul.f32.gmra.mxu0 %v72
    %v125 = vpop.f32.mrf.mxu0
    %v126 = vadd.f32 0.0, %v125
    %127 = vmatmul.f32.gmra.mxu0 %v73
    %v128 = vpop.f32.mrf.mxu0
    %v129 = vadd.f32 0.0, %v128
    %130 = vmatmul.f32.gmra.mxu0 %v74
    %v131 = vpop.f32.mrf.mxu0
    %v132 = vadd.f32 0.0, %v131
    %133 = vmatmul.f32.gmra.mxu0 %v75
    %v134 = vpop.f32.mrf.mxu0
    %v135 = vadd.f32 0.0, %v134
    %136 = vmatmul.f32.gmra.mxu0 %v76
    %v137 = vpop.f32.mrf.mxu0
    %v138 = vadd.f32 0.0, %v137
    %139 = vmatmul.f32.gmra.mxu0 %v77
    %v140 = vpop.f32.mrf.mxu0
    %v141 = vadd.f32 0.0, %v140
    %142 = vdwg.mxu0
    %p143 = scmp.eq.s32.totalorder 0, 0
    // Predicated region
    $region18: #{tpu_custom_call.1} parent=1 // pred_check
      %p144 = pneg %p143
    $region19: #{tpu_custom_call.1} parent=1 // pred_check_branch
      %146 = sbr.rel (%p144) target = $region21
    $region20: #{tpu_custom_call.1} parent=1 // pred_region
      %147 = vst [vmem:[#allocation2] sm:$0xff] %v96
      %148 = vst [vmem:[#allocation2 + $0x8] sm:$0xff] %v99
      %149 = vst [vmem:[#allocation2 + $0x10] sm:$0xff] %v102
      %150 = vst [vmem:[#allocation2 + $0x18] sm:$0xff] %v105
      %151 = vst [vmem:[#allocation2 + $0x20] sm:$0xff] %v108
      %152 = vst [vmem:[#allocation2 + $0x28] sm:$0xff] %v111
      %153 = vst [vmem:[#allocation2 + $0x30] sm:$0xff] %v114
      %154 = vst [vmem:[#allocation2 + $0x38] sm:$0xff] %v117
      %155 = vst [vmem:[#allocation2 + $0x40] sm:$0xff] %v120
      %156 = vst [vmem:[#allocation2 + $0x48] sm:$0xff] %v123
      %157 = vst [vmem:[#allocation2 + $0x50] sm:$0xff] %v126
      %158 = vst [vmem:[#allocation2 + $0x58] sm:$0xff] %v129
      %159 = vst [vmem:[#allocation2 + $0x60] sm:$0xff] %v132
      %160 = vst [vmem:[#allocation2 + $0x68] sm:$0xff] %v135
      %161 = vst [vmem:[#allocation2 + $0x70] sm:$0xff] %v138
      %162 = vst [vmem:[#allocation2 + $0x78] sm:$0xff] %v141
    $region21: #{tpu_custom_call.1} parent=1 // pred_fallthru
      _
    %p163 = scmp.ne.s32.totalorder 0, 0
    // Predicated region
    $region22: #{tpu_custom_call.1} parent=1 // pred_check
      %p164 = pneg %p163
    $region23: #{tpu_custom_call.1} parent=1 // pred_check_branch
      %166 = sbr.rel (%p164) target = $region25
    $region24: #{tpu_custom_call.1} parent=1 // pred_region
      %v167 = vld [vmem:[#allocation2] sm:$0xff]
      %v168 = vld [vmem:[#allocation2 + $0x8] sm:$0xff]
      %v169 = vld [vmem:[#allocation2 + $0x10] sm:$0xff]
      %v170 = vld [vmem:[#allocation2 + $0x18] sm:$0xff]
      %v171 = vld [vmem:[#allocation2 + $0x20] sm:$0xff]
      %v172 = vld [vmem:[#allocation2 + $0x28] sm:$0xff]
      %v173 = vld [vmem:[#allocation2 + $0x30] sm:$0xff]
      %v174 = vld [vmem:[#allocation2 + $0x38] sm:$0xff]
      %v175 = vld [vmem:[#allocation2 + $0x40] sm:$0xff]
      %v176 = vld [vmem:[#allocation2 + $0x48] sm:$0xff]
      %v177 = vld [vmem:[#allocation2 + $0x50] sm:$0xff]
      %v178 = vld [vmem:[#allocation2 + $0x58] sm:$0xff]
      %v179 = vld [vmem:[#allocation2 + $0x60] sm:$0xff]
      %v180 = vld [vmem:[#allocation2 + $0x68] sm:$0xff]
      %v181 = vld [vmem:[#allocation2 + $0x70] sm:$0xff]
      %v182 = vld [vmem:[#allocation2 + $0x78] sm:$0xff]
      %v183 = vadd.f32 %v167, %v96
      %v184 = vadd.f32 %v168, %v99
      %v185 = vadd.f32 %v169, %v102
      %v186 = vadd.f32 %v170, %v105
      %v187 = vadd.f32 %v171, %v108
      %v188 = vadd.f32 %v172, %v111
      %v189 = vadd.f32 %v173, %v114
      %v190 = vadd.f32 %v174, %v117
      %v191 = vadd.f32 %v175, %v120
      %v192 = vadd.f32 %v176, %v123
      %v193 = vadd.f32 %v177, %v126
      %v194 = vadd.f32 %v178, %v129
      %v195 = vadd.f32 %v179, %v132
      %v196 = vadd.f32 %v180, %v135
      %v197 = vadd.f32 %v181, %v138
      %v198 = vadd.f32 %v182, %v141
      %199 = vst [vmem:[#allocation2] sm:$0xff] %v183
      %200 = vst [vmem:[#allocation2 + $0x8] sm:$0xff] %v184
      %201 = vst [vmem:[#allocation2 + $0x10] sm:$0xff] %v185
      %202 = vst [vmem:[#allocation2 + $0x18] sm:$0xff] %v186
      %203 = vst [vmem:[#allocation2 + $0x20] sm:$0xff] %v187
      %204 = vst [vmem:[#allocation2 + $0x28] sm:$0xff] %v188
      %205 = vst [vmem:[#allocation2 + $0x30] sm:$0xff] %v189
      %206 = vst [vmem:[#allocation2 + $0x38] sm:$0xff] %v190
      %207 = vst [vmem:[#allocation2 + $0x40] sm:$0xff] %v191
      %208 = vst [vmem:[#allocation2 + $0x48] sm:$0xff] %v192
      %209 = vst [vmem:[#allocation2 + $0x50] sm:$0xff] %v193
      %210 = vst [vmem:[#allocation2 + $0x58] sm:$0xff] %v194
      %211 = vst [vmem:[#allocation2 + $0x60] sm:$0xff] %v195
      %212 = vst [vmem:[#allocation2 + $0x68] sm:$0xff] %v196
      %213 = vst [vmem:[#allocation2 + $0x70] sm:$0xff] %v197
      %214 = vst [vmem:[#allocation2 + $0x78] sm:$0xff] %v198
    $region25: #{tpu_custom_call.1} parent=1 // pred_fallthru
      _
    // Predicated region
    $region26: #{tpu_custom_call.1} parent=1 // pred_check
      %p215 = pneg %p143
    $region27: #{tpu_custom_call.1} parent=1 // pred_check_branch
      %217 = sbr.rel (%p215) target = $region29
    $region28: #{tpu_custom_call.1} parent=1 // pred_region
      %v218 = vld [vmem:[#allocation2] sm:$0xff]
      %v219 = vld [vmem:[#allocation2 + $0x8] sm:$0xff]
      %v220 = vld [vmem:[#allocation2 + $0x10] sm:$0xff]
      %v221 = vld [vmem:[#allocation2 + $0x18] sm:$0xff]
      %v222 = vld [vmem:[#allocation2 + $0x20] sm:$0xff]
      %v223 = vld [vmem:[#allocation2 + $0x28] sm:$0xff]
      %v224 = vld [vmem:[#allocation2 + $0x30] sm:$0xff]
      %v225 = vld [vmem:[#allocation2 + $0x38] sm:$0xff]
      %v226 = vld [vmem:[#allocation2 + $0x40] sm:$0xff]
      %v227 = vld [vmem:[#allocation2 + $0x48] sm:$0xff]
      %v228 = vld [vmem:[#allocation2 + $0x50] sm:$0xff]
      %v229 = vld [vmem:[#allocation2 + $0x58] sm:$0xff]
      %v230 = vld [vmem:[#allocation2 + $0x60] sm:$0xff]
      %v231 = vld [vmem:[#allocation2 + $0x68] sm:$0xff]
      %v232 = vld [vmem:[#allocation2 + $0x70] sm:$0xff]
      %v233 = vld [vmem:[#allocation2 + $0x78] sm:$0xff]
      %234 = vst [vmem:[#allocation8] sm:$0xff] %v218
      %235 = vst [vmem:[#allocation8 + $0x8] sm:$0xff] %v219
      %236 = vst [vmem:[#allocation8 + $0x10] sm:$0xff] %v220
      %237 = vst [vmem:[#allocation8 + $0x18] sm:$0xff] %v221
      %238 = vst [vmem:[#allocation8 + $0x20] sm:$0xff] %v222
      %239 = vst [vmem:[#allocation8 + $0x28] sm:$0xff] %v223
      %240 = vst [vmem:[#allocation8 + $0x30] sm:$0xff] %v224
      %241 = vst [vmem:[#allocation8 + $0x38] sm:$0xff] %v225
      %242 = vst [vmem:[#allocation8 + $0x40] sm:$0xff] %v226
      %243 = vst [vmem:[#allocation8 + $0x48] sm:$0xff] %v227
      %244 = vst [vmem:[#allocation8 + $0x50] sm:$0xff] %v228
      %245 = vst [vmem:[#allocation8 + $0x58] sm:$0xff] %v229
      %246 = vst [vmem:[#allocation8 + $0x60] sm:$0xff] %v230
      %247 = vst [vmem:[#allocation8 + $0x68] sm:$0xff] %v231
      %248 = vst [vmem:[#allocation8 + $0x70] sm:$0xff] %v232
      %249 = vst [vmem:[#allocation8 + $0x78] sm:$0xff] %v233
    $region29: #{tpu_custom_call.1} parent=1 // pred_fallthru
      _
    // Predicated region
    $region30: #{tpu_custom_call.1} parent=1 // pred_check
      _
    $region31: #{tpu_custom_call.1} parent=1 // pred_check_branch
      %251 = sbr.rel (0) target = $region33
    $region32: #{tpu_custom_call.1} parent=1 // pred_region
      %253 = vsyncadd [#allocation5], 0
      %s254 = sshll.u32 [#allocation8], 4
      %s255 = int_to_ptr.vmem [resolvable:$true] %s254
      %s256 = sshll.u32 %s2, 4
      %s257 = int_to_ptr.hbm [resolvable:$true] %s256
      %262 = dma.vmem_to_hbm [thread:$0]  %s255, 2048, %s257, [#allocation5], 128, 128, 8
    $region33: #{tpu_custom_call.1} parent=1 // pred_fallthru
      _
    // Predicated region
    $region34: #{tpu_custom_call.1} parent=1 // pred_check
      _
    $region35: #{tpu_custom_call.1} parent=1 // pred_check_branch
      %264 = sbr.rel (0) target = $region37
    $region36: #{tpu_custom_call.1} parent=1 // pred_region
      %266 = dma.done [#allocation5], 2048
    $region37: #{tpu_custom_call.1} parent=1 // pred_fallthru
      _
    %267 = vsyncpa [#allocation4], 1
    %268 = vsyncpa [#allocation7], 1
    %269 = vsyncpa [#allocation5], 1

</llo_original>
